<compile_context>
chip_gen: v7x
topology: tpu7x:2x2x1
jax: 0.10.0
libtpu: 0.0.40
codegen_flags: <defaults>
</compile_context>

<pallas_src>
import functools

import jax
import jax.numpy as jnp
from jax.experimental import pallas as pl
from jax.experimental.pallas import tpu as pltpu


def style_loss_kernel(feat_ref, target_ref, g_ref, loss_ref, *,
                      scale, cd, tk, ragged, compute_dtype):
    """One K-tile of the Gram accumulation; finalize (scale + MSE) at the end.

    feat_ref:   (ab, tk) streamed feature tile (input dtype) in VMEM
    target_ref: (ab, ab) f32 target (resident) in VMEM
    g_ref:      (ab, ab) f32 output, resident across the K grid (accumulator)
    loss_ref:   (1, 1)   f32 scalar output in SMEM
    """
    k = pl.program_id(0)
    nk = pl.num_programs(0)

    @pl.when(k == 0)
    def _init():
        g_ref[...] = jnp.zeros_like(g_ref)

    f = feat_ref[...]
    if ragged:
        # The last K tile runs past cd; zero the out-of-range columns so the
        # (undefined) padded data contributes nothing to the Gram sum.
        remaining = cd - k * tk
        col = jax.lax.broadcasted_iota(jnp.int32, f.shape, 1)
        f = jnp.where(col < remaining, f, 0.0)
    if f.dtype != compute_dtype:
        f = f.astype(compute_dtype)  # in-kernel cast: VPU work hidden under MXU/DMA

    # F @ F.T: contract last dim with last dim -> no explicit transpose
    # materialized; f32 accumulation on the MXU.
    g_ref[...] += jax.lax.dot_general(
        f, f,
        dimension_numbers=(((1,), (1,)), ((), ())),
        preferred_element_type=jnp.float32,
    )

    @pl.when(k == nk - 1)
    def _finalize():
        # Apply weight / (a*b*c*d) once, on the fully accumulated sum.
        G = g_ref[...] * jnp.float32(scale)
        g_ref[...] = G
        diff = G - target_ref[...]
        n_elems = G.shape[0] * G.shape[1]
        loss_ref[0, 0] = jnp.sum(diff * diff) * jnp.float32(1.0 / n_elems)


def style_loss_forward(x, target_scaled, weight, *,
                       compute_dtype=jnp.float32, max_tk=None):
    """Replicates StyleLoss.forward.

    Args:
      x:             (a, b, c, d) float array (NCHW feature map).
      target_scaled: (a*b, a*b) precomputed `gram_matrix(target) * weight`.
      weight:        python float.
      compute_dtype: MXU operand dtype.  float32 (default) matches the PyTorch
                     math exactly; bfloat16 trades a little accuracy for MXU
                     peak on compute-bound layers (cast is done in-kernel, so
                     HBM traffic is identical either way).
      max_tk:        optional cap on the K tile (test / tuning hook).

    Returns:
      (input, G, loss) -- forward() returns input.clone(); G and loss are the
      attributes the module stores.  JAX arrays are immutable, so the input is
      returned without an extra copy.
    """
    a, b, c, d = x.shape
    ab, cd = a * b, c * d

    feats = x.reshape(ab, cd)          # streamed at input dtype; cast in-kernel
    target_scaled = jnp.asarray(target_scaled, dtype=jnp.float32)
    in_itemsize = feats.dtype.itemsize

    # --- K-tile selection: keep tk at the VMEM-budgeted cap; no divisibility
    # requirement (ragged last tile is masked in-kernel).
    n_buf = 3                              # desired feature pipeline depth
    feat_budget = 12 << 20                 # bytes for all in-flight feature tiles
    tk = max(128, (feat_budget // (n_buf * ab * in_itemsize)) // 128 * 128)
    if max_tk is not None:
        tk = max(128, min(tk, (max_tk // 128) * 128))
    if cd <= tk:
        tk = cd                            # single full-extent K block (always legal)
    nk = pl.cdiv(cd, tk)
    ragged = (cd % tk) != 0
    n_buf = n_buf if nk >= n_buf else 2    # triple-buffer only for deep grids

    scale = float(weight) / float(a * b * c * d)

    # --- VMEM budget: each buffer counted once, +25% headroom, capped per
    # generation (v7x has only 64 MiB per TensorCore).
    try:
        vmem_cap = int(pltpu.get_tpu_info().vmem_capacity_bytes)
    except Exception:
        vmem_cap = 64 << 20                # v7x per-TC VMEM: smallest across gens
    vmem_ceiling = min((vmem_cap * 3) // 4, 48 << 20)
    vmem_need = (n_buf * ab * tk * in_itemsize   # streamed feature tiles
                 + 2 * ab * ab * 4               # resident target (worst-case 2 bufs)
                 + 2 * ab * ab * 4)              # resident G accumulator / output
    vmem_limit = int(min(max(vmem_need + vmem_need // 4, 4 << 20), vmem_ceiling))

    cost = pl.CostEstimate(
        flops=2 * ab * ab * cd,
        transcendentals=0,
        bytes_accessed=ab * cd * in_itemsize + 2 * ab * ab * 4 + 4,
    )

    # Streamed feature tiles; 3-deep pipelining when the grid is deep enough.
    feat_spec = pl.BlockSpec((ab, tk), lambda k: (0, k))
    if n_buf == 3:
        try:
            feat_spec = pl.BlockSpec((ab, tk), lambda k: (0, k),
                                     pipeline_mode=pl.Buffered(3))
        except (TypeError, AttributeError, ValueError):
            pass  # JAX without pipeline_mode: fall back to default double buffering

    kernel = functools.partial(
        style_loss_kernel, scale=scale, cd=cd, tk=tk, ragged=ragged,
        compute_dtype=compute_dtype,
    )

    G, loss = pl.pallas_call(
        kernel,
        out_shape=(
            jax.ShapeDtypeStruct((ab, ab), jnp.float32),
            jax.ShapeDtypeStruct((1, 1), jnp.float32),
        ),
        grid=(nk,),
        in_specs=[
            feat_spec,                                   # streamed K tiles
            pl.BlockSpec((ab, ab), lambda k: (0, 0)),    # resident target
        ],
        out_specs=(
            pl.BlockSpec((ab, ab), lambda k: (0, 0)),            # resident G accumulator
            pl.BlockSpec(memory_space=pltpu.MemorySpace.SMEM),    # scalar loss
        ),
        compiler_params=pltpu.CompilerParams(
            dimension_semantics=("arbitrary",),
            vmem_limit_bytes=vmem_limit,
        ),
        cost_estimate=cost,
    )(feats, target_scaled)

    return x, G, loss[0, 0]


def _gram_matrix_ref(x, compute_dtype=jnp.float32):
    """Pure-JAX reference of torch gram_matrix (optionally with bf16 operands)."""
    a, b, c, d = x.shape
    f = x.reshape(a * b, c * d).astype(compute_dtype)
    G = jnp.einsum("ik,jk->ij", f, f, preferred_element_type=jnp.float32)
    return G / (a * b * c * d)


if __name__ == "__main__":
    key = jax.random.PRNGKey(0)
    k_in, k_tgt, k_in2, k_tgt2 = jax.random.split(key, 4)

    weight = 1000.0

    # --- case 1: batch=2, channels=4, spatial=16x16 (cd = 256, single K tile)
    a, b, c, d = 2, 4, 16, 16
    x = jax.random.normal(k_in, (a, b, c, d), dtype=jnp.float32)
    tgt_feat = jax.random.normal(k_tgt, (a, b, c, d), dtype=jnp.float32)
    target_scaled = _gram_matrix_ref(tgt_feat) * weight

    # f32 path (default): exact parity with the PyTorch f32 math.
    out, G, loss = style_loss_forward(x, target_scaled, weight)
    jax.block_until_ready((out, G, loss))
    G_ref = _gram_matrix_ref(x) * weight
    loss_ref = jnp.mean((G_ref - target_scaled) ** 2)
    assert jnp.allclose(G, G_ref, rtol=1e-4, atol=1e-4), "f32 G mismatch"
    assert jnp.allclose(loss, loss_ref, rtol=1e-4, atol=1e-3), "f32 loss mismatch"
    assert jnp.allclose(out, x), "returned input mismatch"

    # bf16 MXU-operand fast path (cast happens in-kernel); compare against a
    # reference using the same bf16 operands with f32 accumulation.
    out_bf, G_bf, loss_bf = style_loss_forward(x, target_scaled, weight,
                                               compute_dtype=jnp.bfloat16)
    jax.block_until_ready((out_bf, G_bf, loss_bf))
    G_ref_bf = _gram_matrix_ref(x, compute_dtype=jnp.bfloat16) * weight
    loss_ref_bf = jnp.mean((G_ref_bf - target_scaled) ** 2)
    assert jnp.allclose(G_bf, G_ref_bf, rtol=1e-3, atol=1e-3), "bf16 G mismatch"
    assert jnp.allclose(loss_bf, loss_ref_bf, rtol=1e-3, atol=1e-2), "bf16 loss mismatch"
    assert jnp.allclose(out_bf, x), "returned input mismatch"

    # --- case 2: spatial 18x18 (cd = 324, NOT a multiple of 128) with a forced
    # small K tile so the multi-step grid, the ragged-tile mask and the 3-deep
    # feature pipeline are all exercised.
    a2, b2, c2, d2 = 2, 4, 18, 18
    x2 = jax.random.normal(k_in2, (a2, b2, c2, d2), dtype=jnp.float32)
    tgt2 = jax.random.normal(k_tgt2, (a2, b2, c2, d2), dtype=jnp.float32)
    target2 = _gram_matrix_ref(tgt2) * weight
    out2, G2, loss2 = style_loss_forward(x2, target2, weight, max_tk=128)
    jax.block_until_ready((out2, G2, loss2))
    G2_ref = _gram_matrix_ref(x2) * weight
    loss2_ref = jnp.mean((G2_ref - target2) ** 2)
    assert jnp.allclose(G2, G2_ref, rtol=1e-4, atol=1e-3), "ragged-K G mismatch"
    assert jnp.allclose(loss2, loss2_ref, rtol=1e-4, atol=1e-3), "ragged-K loss mismatch"
    assert jnp.allclose(out2, x2), "returned input mismatch"

    print("KERNEL_OK")
</pallas_src>

<mosaic_0001>
module attributes {stable_mosaic.version = 11 : i64} {
  func.func @style_loss_kernel(%arg0: i32, %arg1: memref<8x256xf32, #tpu.memory_space<vmem>>, %arg2: memref<8x8xf32, #tpu.memory_space<vmem>>, %arg3: memref<8x8xf32, #tpu.memory_space<vmem>>, %arg4: memref<1x1xf32, #tpu.memory_space<smem>>) attributes {dimension_semantics = [#tpu.dimension_semantics<arbitrary>], iteration_bounds = array<i64: 1>, scalar_prefetch = 0 : i64, scratch_operands = 0 : i64, tpu.core_type = #tpu.core_type<tc>, window_params = [{transform_indices = @transform_0, window_bounds = array<i64: 8, 256>}, {pipeline_mode = #tpu.pipeline_mode<synchronous>, transform_indices = @transform_1, window_bounds = array<i64: 8, 8>}, {pipeline_mode = #tpu.pipeline_mode<synchronous>, transform_indices = @transform_2, window_bounds = array<i64: 8, 8>}, {transform_indices = @transform_3, window_bounds = array<i64: 1, 1>}]} {
    %c0_i32 = arith.constant 0 : i32
    %0 = arith.cmpi eq, %arg0, %c0_i32 : i32
    %1 = arith.extui %0 : i1 to i32
    %c0_i32_0 = arith.constant 0 : i32
    %2 = arith.cmpi ne, %1, %c0_i32_0 : i32
    scf.if %2 {
      %cst_8 = arith.constant 0.000000e+00 : f32
      %11 = vector.broadcast %cst_8 : f32 to vector<8x8xf32>
      %c0_9 = arith.constant 0 : index
      %c0_10 = arith.constant 0 : index
      %12 = vector.load %arg3[%c0_9, %c0_10] : memref<8x8xf32, #tpu.memory_space<vmem>>, vector<8x8xf32>
      tpu.vector_store %arg3[%c0_9, %c0_10], %11 {strides = array<i32>} : memref<8x8xf32, #tpu.memory_space<vmem>>, vector<8x8xf32>,
    } else {
    }
    %c0 = arith.constant 0 : index
    %c0_1 = arith.constant 0 : index
    %3 = vector.load %arg1[%c0, %c0_1] : memref<8x256xf32, #tpu.memory_space<vmem>>, vector<8x256xf32>
    %c0_2 = arith.constant 0 : index
    %c0_3 = arith.constant 0 : index
    %4 = vector.load %arg3[%c0_2, %c0_3] : memref<8x8xf32, #tpu.memory_space<vmem>>, vector<8x8xf32>
    %cst = arith.constant dense<0.000000e+00> : vector<8x8xf32>
    %5 = tpu.matmul %3, %3, %cst {dimension_numbers = #tpu.dot_dimension_numbers<[1], [1], [0], [0], [0, 0, 1, 0], [], []>} : vector<8x256xf32>, vector<8x256xf32>, vector<8x8xf32> -> vector<8x8xf32>
    %6 = arith.addf %4, %5 : vector<8x8xf32>
    %c0_4 = arith.constant 0 : index
    %c0_5 = arith.constant 0 : index
    %7 = vector.load %arg3[%c0_4, %c0_5] : memref<8x8xf32, #tpu.memory_space<vmem>>, vector<8x8xf32>
    tpu.vector_store %arg3[%c0_4, %c0_5], %6 {strides = array<i32>} : memref<8x8xf32, #tpu.memory_space<vmem>>, vector<8x8xf32>,
    %c0_i32_6 = arith.constant 0 : i32
    %8 = arith.cmpi eq, %arg0, %c0_i32_6 : i32
    %9 = arith.extui %8 : i1 to i32
    %c0_i32_7 = arith.constant 0 : i32
    %10 = arith.cmpi ne, %9, %c0_i32_7 : i32
    scf.if %10 {
      %c0_8 = arith.constant 0 : index
      %c0_9 = arith.constant 0 : index
      %11 = vector.load %arg3[%c0_8, %c0_9] : memref<8x8xf32, #tpu.memory_space<vmem>>, vector<8x8xf32>
      %cst_10 = arith.constant 0.48828125 : f32
      %12 = vector.broadcast %cst_10 : f32 to vector<8x8xf32>
      %13 = arith.mulf %11, %12 : vector<8x8xf32>
      %c0_11 = arith.constant 0 : index
      %c0_12 = arith.constant 0 : index
      %14 = vector.load %arg3[%c0_11, %c0_12] : memref<8x8xf32, #tpu.memory_space<vmem>>, vector<8x8xf32>
      tpu.vector_store %arg3[%c0_11, %c0_12], %13 {strides = array<i32>} : memref<8x8xf32, #tpu.memory_space<vmem>>, vector<8x8xf32>,
      %c0_13 = arith.constant 0 : index
      %c0_14 = arith.constant 0 : index
      %15 = vector.load %arg2[%c0_13, %c0_14] : memref<8x8xf32, #tpu.memory_space<vmem>>, vector<8x8xf32>
      %16 = arith.subf %13, %15 : vector<8x8xf32>
      %17 = arith.mulf %16, %16 : vector<8x8xf32>
      %18 = vector.shape_cast %17 : vector<8x8xf32> to vector<1x8x8xf32>
      %cst_15 = arith.constant dense<0.000000e+00> : vector<1xf32>
      %19 = vector.multi_reduction <add>, %18, %cst_15 [1, 2] : vector<1x8x8xf32> to vector<1xf32>
      %20 = vector.shape_cast %19 : vector<1xf32> to vector<1x1x1xf32>
      %21 = vector.extract %20[0, 0, 0] : f32 from vector<1x1x1xf32>
      %cst_16 = arith.constant 1.562500e-02 : f32
      %22 = arith.mulf %21, %cst_16 : f32
      %c0_17 = arith.constant 0 : index
      %c0_18 = arith.constant 0 : index
      %23 = memref.load %arg4[%c0_17, %c0_18] : memref<1x1xf32, #tpu.memory_space<smem>>
      memref.store %22, %arg4[%c0_17, %c0_18] : memref<1x1xf32, #tpu.memory_space<smem>>
    } else {
    }
    return
  }
  func.func @transform_0(%arg0: i32) -> (i32, i32) {
    %c0_i32 = arith.constant 0 : i32
    %c0_i32_0 = arith.constant 0 : i32
    return %c0_i32, %arg0 : i32, i32
  }
  func.func @transform_1(%arg0: i32) -> (i32, i32) {
    %c0_i32 = arith.constant 0 : i32
    %c0_i32_0 = arith.constant 0 : i32
    %c0_i32_1 = arith.constant 0 : i32
    return %c0_i32, %c0_i32_0 : i32, i32
  }
  func.func @transform_2(%arg0: i32) -> (i32, i32) {
    %c0_i32 = arith.constant 0 : i32
    %c0_i32_0 = arith.constant 0 : i32
    %c0_i32_1 = arith.constant 0 : i32
    return %c0_i32, %c0_i32_0 : i32, i32
  }
  func.func @transform_3(%arg0: i32) -> (i32, i32) {
    %c0_i32 = arith.constant 0 : i32
    %c0_i32_0 = arith.constant 0 : i32
    %c0_i32_1 = arith.constant 0 : i32
    return %c0_i32, %c0_i32_0 : i32, i32
  }
}

</mosaic_0001>

<llo_original>
// kernel: tpu_custom_call.1
$region0: #{tpu_custom_call.1}
  #allocation0 [shape = 'u32[]', space=smem, size = 0x4, offset = 0x4, fixed_abs, tag = 'smem constant byte address 0x4 - core index']
  #allocation1 [shape = 'u32[144,128]{1,0:T(1,128)}', space=vmem, size = 0x12000, scoped, tag = 'internal scratch']
  %s0 = inlined_call_operand.hbm [shape: f32[8,256], index: 0, kind: input, shape index: {}]
  %s1 = inlined_call_operand.hbm [shape: f32[8,8], index: 1, kind: input, shape index: {}]
  %s2 = inlined_call_operand.hbm [shape: f32[8,8], index: 2, kind: output, shape index: {0}]
  %s3 = inlined_call_operand.hbm [shape: f32[1,1], index: 3, kind: output, shape index: {1}]
  %4 = xla_tuple %s2, %s3
  %s5 = sld [smem:[#allocation0]]
  $region42: #{tpu_custom_call.1} parent=0
    _
  %s7 = ssub.s32 1, %s5
  %s8 = scalar_select 0, %s7, %s5
  $region1: #{tpu_custom_call.1} parent=0
    #allocation2 [shape = 'u8[8192]{0}', space=vmem, size = 0x2000, scoped, tag = 'input window, operand 0, single buffered']
    #allocation3 [shape = 's32[1]{0}', space=sflag, size = 0x4, scoped, tag = 'scoped memory for tpu_custom_call.1']
    #allocation4 [shape = 's32[1]{0}', space=sflag, size = 0x4, scoped, tag = 'scoped memory for tpu_custom_call.1']
    #allocation5 [shape = 's32[1]{0}', space=sflag, size = 0x4, scoped, tag = 'scoped memory for tpu_custom_call.1']
    #allocation6 [shape = 'u8[4096]{0}', space=vmem, size = 0x1000, scoped, tag = 'input window, operand 1, single buffered']
    #allocation7 [shape = 's32[1]{0}', space=sflag, size = 0x4, scoped, tag = 'scoped memory for tpu_custom_call.1']
    #allocation8 [shape = 'u8[4096]{0}', space=vmem, size = 0x1000, scoped, tag = 'output window, operand 0, single buffered']
    #allocation9 [shape = 'u8[512]{0}', space=smem, size = 0x200, scoped, tag = 'output window, operand 1, single buffered']
    %9 = vsyncpa [#allocation3], 0
    %10 = vsyncpa [#allocation7], 0
    %11 = vsyncpa [#allocation4], 0
    %12 = vsyncpa [#allocation5], 0
    // Predicated region
    $region2: #{tpu_custom_call.1} parent=1 // pred_check
      _
    $region3: #{tpu_custom_call.1} parent=1 // pred_check_branch
      %14 = sbr.rel (0) target = $region5
    $region4: #{tpu_custom_call.1} parent=1 // pred_region
      %s16 = ssub.s32 256, 256
      %17 = vsyncadd [#allocation3], %s16
      %s19 = sshll.u32 [#allocation2], 4
      %s20 = int_to_ptr.vmem [resolvable:$true] %s19
      %22 = dma.hbm_to_vmem [thread:$0]  %s0, 256, %s20, [#allocation3]
    $region5: #{tpu_custom_call.1} parent=1 // pred_fallthru
      _
    // Predicated region
    $region6: #{tpu_custom_call.1} parent=1 // pred_check
      _
    $region7: #{tpu_custom_call.1} parent=1 // pred_check_branch
      %24 = sbr.rel (0) target = $region9
    $region8: #{tpu_custom_call.1} parent=1 // pred_region
      %s26 = ssub.s32 128, 128
      %27 = vsyncadd [#allocation7], %s26
      %s29 = sshll.u32 [#allocation6], 4
      %s30 = int_to_ptr.vmem [resolvable:$true] %s29
      %32 = dma.hbm_to_vmem [thread:$0]  %s1, 128, %s30, [#allocation7]
    $region9: #{tpu_custom_call.1} parent=1 // pred_fallthru
      _
    // Predicated region
    $region10: #{tpu_custom_call.1} parent=1 // pred_check
      _
    $region11: #{tpu_custom_call.1} parent=1 // pred_check_branch
      %34 = sbr.rel (0) target = $region13
    $region12: #{tpu_custom_call.1} parent=1 // pred_region
      %35 = dma.done [#allocation3], 256
    $region13: #{tpu_custom_call.1} parent=1 // pred_fallthru
      _
    // Predicated region
    $region14: #{tpu_custom_call.1} parent=1 // pred_check
      _
    $region15: #{tpu_custom_call.1} parent=1 // pred_check_branch
      %37 = sbr.rel (0) target = $region17
    $region16: #{tpu_custom_call.1} parent=1 // pred_region
      %38 = dma.done [#allocation7], 128
    $region17: #{tpu_custom_call.1} parent=1 // pred_fallthru
      _
    %p39 = scmp.eq.s32.totalorder 0, 0
    // Predicated region
    $region18: #{tpu_custom_call.1} parent=1 // pred_check
      %p40 = pneg %p39
    $region19: #{tpu_custom_call.1} parent=1 // pred_check_branch
      %42 = sbr.rel (%p40) target = $region21
    $region20: #{tpu_custom_call.1} parent=1 // pred_region
      %vm43 = vcmask 64512
      %44 = vst.msk [vmem:[#allocation8] sm:$0xff] %vm43, 0.0
    $region21: #{tpu_custom_call.1} parent=1 // pred_fallthru
      _
    %v45 = vld [vmem:[#allocation2] sm:$0xff]
    %v46 = vld [vmem:[#allocation2 + $0x8] sm:$0xff]
    %v47 = vld [vmem:[#allocation8] sm:$0xff]
    %48 = vmatprep.subr.mxu0 %v46
    %49 = vmatpush1.xpose.msra.mxu0 %v45
    %50 = vmatprep.subr.mxu0 0.0
    %51 = vmatpush1.xpose.msra.mxu0 0.0
    %52 = vmatprep.subr.mxu0 0.0
    %53 = vmatpush1.xpose.msra.mxu0 0.0
    %54 = vmatprep.subr.mxu0 0.0
    %55 = vmatpush1.xpose.msra.mxu0 0.0
    %56 = vmatprep.subr.mxu0 0.0
    %57 = vmatpush1.xpose.msra.mxu0 0.0
    %58 = vmatprep.subr.mxu0 0.0
    %59 = vmatpush1.xpose.msra.mxu0 0.0
    %60 = vmatprep.subr.mxu0 0.0
    %61 = vmatpush1.xpose.msra.mxu0 0.0
    %62 = vmatprep.subr.mxu0 0.0
    %63 = vmatpush1.xpose.msra.mxu0 0.0
    %64 = vmatprep.subr.mxu0 0.0
    %65 = vmatpush1.xpose.msra.mxu0 0.0
    %66 = vmatprep.subr.mxu0 0.0
    %67 = vmatpush1.xpose.msra.mxu0 0.0
    %68 = vmatprep.subr.mxu0 0.0
    %69 = vmatpush1.xpose.msra.mxu0 0.0
    %70 = vmatprep.subr.mxu0 0.0
    %71 = vmatpush1.xpose.msra.mxu0 0.0
    %72 = vmatprep.subr.mxu0 0.0
    %73 = vmatpush1.xpose.msra.mxu0 0.0
    %74 = vmatprep.subr.mxu0 0.0
    %75 = vmatpush1.xpose.msra.mxu0 0.0
    %76 = vmatprep.subr.mxu0 0.0
    %77 = vmatpush1.xpose.msra.mxu0 0.0
    %78 = vmatprep.subr.mxu0 0.0
    %79 = vmatpush1.xpose.msra.mxu0 0.0
    %80 = vmatprep.subr.mxu0 0.0
    %81 = vmatpush1.xpose.msra.mxu0 0.0
    %82 = vmatprep.subr.mxu0 0.0
    %83 = vmatpush1.xpose.msra.mxu0 0.0
    %84 = vmatprep.subr.mxu0 0.0
    %85 = vmatpush1.xpose.msra.mxu0 0.0
    %86 = vmatprep.subr.mxu0 0.0
    %87 = vmatpush1.xpose.msra.mxu0 0.0
    %88 = vmatprep.subr.mxu0 0.0
    %89 = vmatpush1.xpose.msra.mxu0 0.0
    %90 = vmatprep.subr.mxu0 0.0
    %91 = vmatpush1.xpose.msra.mxu0 0.0
    %92 = vmatprep.subr.mxu0 0.0
    %93 = vmatpush1.xpose.msra.mxu0 0.0
    %94 = vmatprep.subr.mxu0 0.0
    %95 = vmatpush1.xpose.msra.mxu0 0.0
    %96 = vmatprep.subr.mxu0 0.0
    %97 = vmatpush1.xpose.msra.mxu0 0.0
    %98 = vmatprep.subr.mxu0 0.0
    %99 = vmatpush1.xpose.msra.mxu0 0.0
    %100 = vmatprep.subr.mxu0 0.0
    %101 = vmatpush1.xpose.msra.mxu0 0.0
    %102 = vmatprep.subr.mxu0 0.0
    %103 = vmatpush1.xpose.msra.mxu0 0.0
    %104 = vmatprep.subr.mxu0 0.0
    %105 = vmatpush1.xpose.msra.mxu0 0.0
    %106 = vmatprep.subr.mxu0 0.0
    %107 = vmatpush1.xpose.msra.mxu0 0.0
    %108 = vmatprep.subr.mxu0 0.0
    %109 = vmatpush1.xpose.msra.mxu0 0.0
    %110 = vmatprep.subr.mxu0 0.0
    %111 = vmatpush1.xpose.msra.mxu0 0.0
    %112 = vmatprep.mubr.f32.mxu0 %v46
    %113 = vmatmul.mubr.f32.gmra.mrb[0].mxu0 %v45
    %v114 = vpop.f32.mrb[0].mxu0
    %v115 = vadd.f32 0.0, %v114
    %v116 = vpop.f32.mrb[0].mxu0
    %117 = vdwg.mxu0
    %v118 = vadd.f32 %v47, %v115
    %vm119 = vcmask 64512
    %120 = vst.msk [vmem:[#allocation8] sm:$0xff] %vm119, %v118
    // Predicated region
    $region22: #{tpu_custom_call.1} parent=1 // pred_check
      %p121 = pneg %p39
    $region23: #{tpu_custom_call.1} parent=1 // pred_check_branch
      %123 = sbr.rel (%p121) target = $region25
    $region24: #{tpu_custom_call.1} parent=1 // pred_region
      %v124 = vld [vmem:[#allocation8] sm:$0xff]
      %v125 = vmul.f32 %v124, 0.48828125
      %126 = vst.msk [vmem:[#allocation8] sm:$0xff] %vm119, %v125
      %v127 = vld [vmem:[#allocation6] sm:$0xff]
      %v128 = vsub.f32 %v125, %v127
      %v129 = vmul.f32 %v128, %v128
      %v130 = vsel %vm119, %v129, 0.0
      %131 = vadd.xlane.f32.xlu0 %v130
      %v132 = vpop.xlane.xlu0 %131
      %v133 = vrot.slane %v132, 4
      %v134 = vadd.f32 %v132, %v133
      %v135 = vrot.slane %v134, 2
      %v136 = vadd.f32 %v134, %v135
      %v137 = vrot.slane %v136, 1
      %v138 = vadd.f32 %v136, %v137
      %s139 = vtos %v138
      %s140 = smul.f32 %s139, 0.015625
      %s141 = scalar_lea.smem [#allocation9], 0
      %142 = sst [smem:[%s141]] %s140
    $region25: #{tpu_custom_call.1} parent=1 // pred_fallthru
      _
    // Predicated region
    $region26: #{tpu_custom_call.1} parent=1 // pred_check
      _
    $region27: #{tpu_custom_call.1} parent=1 // pred_check_branch
      %144 = sbr.rel (0) target = $region29
    $region28: #{tpu_custom_call.1} parent=1 // pred_region
      %s146 = ssub.s32 128, 128
      %147 = vsyncadd [#allocation4], %s146
      %s149 = sshll.u32 [#allocation8], 4
      %s150 = int_to_ptr.vmem [resolvable:$true] %s149
      %152 = dma.vmem_to_hbm [thread:$0]  %s150, 128, %s2, [#allocation4]
    $region29: #{tpu_custom_call.1} parent=1 // pred_fallthru
      _
    // Predicated region
    $region30: #{tpu_custom_call.1} parent=1 // pred_check
      _
    $region31: #{tpu_custom_call.1} parent=1 // pred_check_branch
      %154 = sbr.rel (0) target = $region33
    $region32: #{tpu_custom_call.1} parent=1 // pred_region
      %s156 = ssub.s32 16, 16
      %157 = vsyncadd [#allocation5], %s156
      %160 = dma.smem_to_hbm [#allocation9], 16, %s3, [#allocation5]
    $region33: #{tpu_custom_call.1} parent=1 // pred_fallthru
      _
    // Predicated region
    $region34: #{tpu_custom_call.1} parent=1 // pred_check
      _
    $region35: #{tpu_custom_call.1} parent=1 // pred_check_branch
      %162 = sbr.rel (0) target = $region37
    $region36: #{tpu_custom_call.1} parent=1 // pred_region
      %163 = dma.done [#allocation4], 128
    $region37: #{tpu_custom_call.1} parent=1 // pred_fallthru
      _
    // Predicated region
    $region38: #{tpu_custom_call.1} parent=1 // pred_check
      _
    $region39: #{tpu_custom_call.1} parent=1 // pred_check_branch
      %165 = sbr.rel (0) target = $region41
    $region40: #{tpu_custom_call.1} parent=1 // pred_region
      %166 = dma.done [#allocation5], 16
    $region41: #{tpu_custom_call.1} parent=1 // pred_fallthru
      _
    %167 = sfence
    %168 = vsyncpa [#allocation3], 1
    %169 = vsyncpa [#allocation7], 1
    %170 = vsyncpa [#allocation4], 1
    %171 = vsyncpa [#allocation5], 1

</llo_original>
